<compile_context>
chip_gen: v6e
topology: v6e:2x2x1
jax: 0.10.0
libtpu: 0.0.40
codegen_flags: <defaults>
</compile_context>

<pallas_src>
import functools

import jax
import jax.numpy as jnp
from jax.experimental import pallas as pl
from jax.experimental.pallas import tpu as pltpu

DROP_P = 0.2
KEEP_SCALE = 1.0 / (1.0 - DROP_P)


def _hash_u32(x):
    # "lowbias32" finalizer: cheap, well-mixed 32-bit hash (pure VPU ops).
    x = x ^ (x >> jnp.uint32(16))
    x = x * jnp.uint32(0x7FEB352D)
    x = x ^ (x >> jnp.uint32(15))
    x = x * jnp.uint32(0x846CA68B)
    x = x ^ (x >> jnp.uint32(16))
    return x


def softmax_dropout_kernel(seed_ref, x_ref, o_ref):
    # seed_ref: SMEM scalar-prefetch int32[1]; x_ref/o_ref: (tile_r, D) VMEM tiles.
    tile_r, d = x_ref.shape
    x = x_ref[...].astype(jnp.float32)

    # --- numerically stable softmax over the last dim (f32) ---
    m = jnp.max(x, axis=-1, keepdims=True)
    e = jnp.exp(x - m)
    s = jnp.sum(e, axis=-1, keepdims=True)
    # Plain divide: kernel is memory-bound so the divide is hidden under DMA.
    sm = e / s

    # --- dropout(p=0.2): stateless hash of the global element index ---
    base = (pl.program_id(0) * (tile_r * d)).astype(jnp.uint32)
    row = jax.lax.broadcasted_iota(jnp.int32, (tile_r, d), 0)
    col = jax.lax.broadcasted_iota(jnp.int32, (tile_r, d), 1)
    idx = (row * d + col).astype(jnp.uint32) + base
    seed = seed_ref[0].astype(jnp.uint32) * jnp.uint32(0x9E3779B9)
    bits = _hash_u32(idx + seed)

    # Keep with probability 1 - p via an integer threshold compare (no f32 uniform).
    threshold = jnp.uint32(int(DROP_P * (1 << 32)))  # 858993459
    keep = bits >= threshold
    out = jnp.where(keep, sm * KEEP_SCALE, 0.0)

    o_ref[...] = out.astype(o_ref.dtype)


@functools.partial(jax.jit, static_argnames=("tile_r",))
def net_forward(x, seed, *, tile_r=2048):
    """x: (B, H, S, D). Returns dropout(softmax(x, -1), p=0.2, training=True)."""
    B, H, S, D = x.shape
    rows = B * H * S
    x2 = x.reshape(rows, D)

    tr = min(tile_r, rows)
    while rows % tr != 0:  # static (shape-derived) fallback; never hit for 2^k shapes
        tr //= 2

    out2 = pl.pallas_call(
        softmax_dropout_kernel,
        out_shape=jax.ShapeDtypeStruct((rows, D), x.dtype),
        grid_spec=pltpu.PrefetchScalarGridSpec(
            num_scalar_prefetch=1,
            grid=(rows // tr,),
            in_specs=[pl.BlockSpec((tr, D), lambda i, seed: (i, 0))],
            out_specs=pl.BlockSpec((tr, D), lambda i, seed: (i, 0)),
        ),
        compiler_params=pltpu.CompilerParams(
            # Steps are fully independent (stateless RNG) -> shard across TCs on v7x.
            dimension_semantics=("parallel",),
            # Large tiles fit comfortably; raise v5e's 16 MiB default scoped VMEM.
            vmem_limit_bytes=32 * 1024 * 1024,
        ),
    )(seed, x2)

    return out2.reshape(B, H, S, D)


if __name__ == "__main__":
    # Small shapes consistent with the module's (B, H, S, D) = (128, 12, 128, 128).
    B, H, S, D = 2, 4, 16, 128
    key = jax.random.PRNGKey(0)
    x = jax.random.uniform(key, (B, H, S, D), dtype=jnp.float32).astype(jnp.bfloat16)
    seed = jnp.array([0], dtype=jnp.int32)

    out = jax.block_until_ready(net_forward(x, seed))

    assert out.shape == (B, H, S, D)
    assert out.dtype == x.dtype

    ref_sm = jax.nn.softmax(x.astype(jnp.float32), axis=-1)
    out_f = out.astype(jnp.float32)
    kept = out_f != 0.0
    # Where kept, out ~= softmax / (1 - p); dropped elements are exactly zero.
    diff = jnp.where(kept, jnp.abs(out_f - ref_sm / (1.0 - DROP_P)), 0.0)
    assert float(jnp.max(diff)) < 2e-2, float(jnp.max(diff))
    keep_frac = float(jnp.mean(kept.astype(jnp.float32)))
    assert 0.7 < keep_frac < 0.9, keep_frac

    print("KERNEL_OK")
</pallas_src>

<mosaic_0001>
module attributes {stable_mosaic.version = 11 : i64} {
  func.func @softmax_dropout_kernel(%arg0: i32, %arg1: memref<1xi32, #tpu.memory_space<smem>>, %arg2: memref<128x128xbf16, #tpu.memory_space<vmem>>, %arg3: memref<128x128xbf16, #tpu.memory_space<vmem>>) attributes {dimension_semantics = [#tpu.dimension_semantics<parallel>], iteration_bounds = array<i64: 1>, scalar_prefetch = 1 : i64, scratch_operands = 0 : i64, tpu.core_type = #tpu.core_type<tc>, window_params = [{transform_indices = @transform_0, window_bounds = array<i64: 128, 128>}, {transform_indices = @transform_1, window_bounds = array<i64: 128, 128>}]} {
    %c0 = arith.constant 0 : index
    %c0_0 = arith.constant 0 : index
    %0 = vector.load %arg2[%c0, %c0_0] : memref<128x128xbf16, #tpu.memory_space<vmem>>, vector<128x128xbf16>
    %1 = arith.extf %0 : vector<128x128xbf16> to vector<128x128xf32>
    %cst = arith.constant dense<0xFF800000> : vector<128xf32>
    %2 = vector.multi_reduction <maximumf>, %1, %cst [1] : vector<128x128xf32> to vector<128xf32>
    %3 = vector.shape_cast %2 : vector<128xf32> to vector<128x1xf32>
    %4 = vector.broadcast %3 : vector<128x1xf32> to vector<128x128xf32>
    %5 = arith.subf %1, %4 : vector<128x128xf32>
    %6 = math.exp %5 : vector<128x128xf32>
    %cst_1 = arith.constant dense<0.000000e+00> : vector<128xf32>
    %7 = vector.multi_reduction <add>, %6, %cst_1 [1] : vector<128x128xf32> to vector<128xf32>
    %8 = vector.shape_cast %7 : vector<128xf32> to vector<128x1xf32>
    %9 = vector.broadcast %8 : vector<128x1xf32> to vector<128x128xf32>
    %10 = arith.divf %6, %9 : vector<128x128xf32>
    %c16384_i32 = arith.constant 16384 : i32
    %11 = arith.muli %arg0, %c16384_i32 : i32
    %12 = tpu.iota {dimensions = array<i32: 0>} : vector<128x128xi32>
    %13 = tpu.iota {dimensions = array<i32: 1>} : vector<128x128xi32>
    %c128_i32 = arith.constant 128 : i32
    %14 = vector.broadcast %c128_i32 : i32 to vector<128x128xi32>
    %15 = arith.muli %12, %14 : vector<128x128xi32>
    %16 = arith.addi %15, %13 : vector<128x128xi32>
    %17 = vector.broadcast %11 : i32 to vector<128x128xi32>
    %18 = arith.addi %16, %17 : vector<128x128xi32>
    %c0_2 = arith.constant 0 : index
    %19 = memref.load %arg1[%c0_2] : memref<1xi32, #tpu.memory_space<smem>>
    %c-1640531527_i32 = arith.constant -1640531527 : i32
    %20 = arith.muli %19, %c-1640531527_i32 : i32
    %21 = vector.broadcast %20 : i32 to vector<128x128xi32>
    %22 = arith.addi %18, %21 : vector<128x128xi32>
    %c16_i32 = arith.constant 16 : i32
    %23 = vector.broadcast %c16_i32 : i32 to vector<128x128xi32>
    %24 = arith.shrui %22, %23 : vector<128x128xi32>
    %25 = arith.xori %22, %24 : vector<128x128xi32>
    %c2146121005_i32 = arith.constant 2146121005 : i32
    %26 = vector.broadcast %c2146121005_i32 : i32 to vector<128x128xi32>
    %27 = arith.muli %25, %26 : vector<128x128xi32>
    %c15_i32 = arith.constant 15 : i32
    %28 = vector.broadcast %c15_i32 : i32 to vector<128x128xi32>
    %29 = arith.shrui %27, %28 : vector<128x128xi32>
    %30 = arith.xori %27, %29 : vector<128x128xi32>
    %c-2073254261_i32 = arith.constant -2073254261 : i32
    %31 = vector.broadcast %c-2073254261_i32 : i32 to vector<128x128xi32>
    %32 = arith.muli %30, %31 : vector<128x128xi32>
    %c16_i32_3 = arith.constant 16 : i32
    %33 = vector.broadcast %c16_i32_3 : i32 to vector<128x128xi32>
    %34 = arith.shrui %32, %33 : vector<128x128xi32>
    %35 = arith.xori %32, %34 : vector<128x128xi32>
    %c858993459_i32 = arith.constant 858993459 : i32
    %36 = vector.broadcast %c858993459_i32 : i32 to vector<128x128xi32>
    %37 = arith.cmpi uge, %35, %36 : vector<128x128xi32>
    %cst_4 = arith.constant 1.250000e+00 : f32
    %38 = vector.broadcast %cst_4 : f32 to vector<128x128xf32>
    %39 = arith.mulf %10, %38 : vector<128x128xf32>
    %cst_5 = arith.constant 0.000000e+00 : f32
    %40 = vector.broadcast %cst_5 : f32 to vector<128x128xf32>
    %41 = arith.select %37, %39, %40 : vector<128x128xi1>, vector<128x128xf32>
    %42 = arith.truncf %41 : vector<128x128xf32> to vector<128x128xbf16>
    %c0_6 = arith.constant 0 : index
    %c0_7 = arith.constant 0 : index
    %43 = vector.load %arg3[%c0_6, %c0_7] : memref<128x128xbf16, #tpu.memory_space<vmem>>, vector<128x128xbf16>
    tpu.vector_store %arg3[%c0_6, %c0_7], %42 {strides = array<i32>} : memref<128x128xbf16, #tpu.memory_space<vmem>>, vector<128x128xbf16>,
    return
  }
  func.func @transform_0(%arg0: i32, %arg1: memref<1xi32, #tpu.memory_space<smem>>) -> (i32, i32) {
    %c0_i32 = arith.constant 0 : i32
    %c0_i32_0 = arith.constant 0 : i32
    return %arg0, %c0_i32 : i32, i32
  }
  func.func @transform_1(%arg0: i32, %arg1: memref<1xi32, #tpu.memory_space<smem>>) -> (i32, i32) {
    %c0_i32 = arith.constant 0 : i32
    %c0_i32_0 = arith.constant 0 : i32
    return %arg0, %c0_i32 : i32, i32
  }
}

</mosaic_0001>

<llo_original>
// kernel: net_forward.1
$region0: #{net_forward.1}
  #allocation0 [shape = 'u32[]', space=smem, size = 0x4, offset = 0x4, fixed_abs, tag = 'smem constant byte address 0x4 - core index']
  #allocation1 [shape = 'u32[144,128]{1,0:T(1,128)}', space=vmem, size = 0x12000, scoped, tag = 'internal scratch']
  #allocation2 [shape = 's32[1]{0}', space=sflag, size = 0x4, scoped, tag = 'scoped memory for net_forward.1']
  #allocation3 [shape = 's32[1]{0:T(128)S(6)}', space=smem, size = 0x200, scoped, tag = 'prefetched SMEM operand 0']
  %s0 = inlined_call_operand.<no memory space> [shape: s32[1], index: 0, kind: input, shape index: {}]
  %s1 = inlined_call_operand.hbm [shape: bf16[128,128], index: 1, kind: input, shape index: {}]
  %s2 = inlined_call_operand.hbm [shape: bf16[128,128], index: 2, kind: output, shape index: {}]
  %s3 = sld [smem:[#allocation0]]
  $region18: #{net_forward.1} parent=0
    _
  %s5 = ssub.s32 1, %s3
  %s6 = scalar_select 0, %s5, %s3
  %7 = sst [smem:[#allocation3]] %s0
  $region1: #{net_forward.1} parent=0
    #allocation4 [shape = 'u8[32768]{0}', space=vmem, size = 0x8000, scoped, tag = 'input window, operand 1, single buffered']
    #allocation5 [shape = 's32[1]{0}', space=sflag, size = 0x4, scoped, tag = 'scoped memory for net_forward.1']
    #allocation6 [shape = 's32[1]{0}', space=sflag, size = 0x4, scoped, tag = 'scoped memory for net_forward.1']
    #allocation7 [shape = 'u8[32768]{0}', space=vmem, size = 0x8000, scoped, tag = 'output window, operand 0, single buffered']
    %8 = vsyncpa [#allocation5], 0
    %9 = vsyncpa [#allocation6], 0
    // Predicated region
    $region2: #{net_forward.1} parent=1 // pred_check
      _
    $region3: #{net_forward.1} parent=1 // pred_check_branch
      %11 = sbr.rel (0) target = $region5
    $region4: #{net_forward.1} parent=1 // pred_region
      %s13 = ssub.s32 1024, 1024
      %14 = vsyncadd [#allocation5], %s13
      %s15 = sshll.u32 [#allocation4], 4
      %s16 = int_to_ptr.vmem [resolvable:$true] %s15
      %21 = dma.hbm_to_vmem [thread:$0]  %s1, 1024, %s16, [#allocation5], 64, 64, 4
    $region5: #{net_forward.1} parent=1 // pred_fallthru
      _
    // Predicated region
    $region6: #{net_forward.1} parent=1 // pred_check
      _
    $region7: #{net_forward.1} parent=1 // pred_check_branch
      %23 = sbr.rel (0) target = $region9
    $region8: #{net_forward.1} parent=1 // pred_region
      %24 = dma.done [#allocation5], 1024
    $region9: #{net_forward.1} parent=1 // pred_fallthru
      _
    %v25 = vld [vmem:[#allocation4] sm:$0xf]
    %v26 = vld [vmem:[#allocation4 + $0x4] sm:$0xf]
    %v27 = vld [vmem:[#allocation4 + $0x8] sm:$0xf]
    %v28 = vld [vmem:[#allocation4 + $0xc] sm:$0xf]
    %v29 = vld [vmem:[#allocation4 + $0x10] sm:$0xf]
    %v30 = vld [vmem:[#allocation4 + $0x14] sm:$0xf]
    %v31 = vld [vmem:[#allocation4 + $0x18] sm:$0xf]
    %v32 = vld [vmem:[#allocation4 + $0x1c] sm:$0xf]
    %v33 = vld [vmem:[#allocation4 + $0x20] sm:$0xf]
    %v34 = vld [vmem:[#allocation4 + $0x24] sm:$0xf]
    %v35 = vld [vmem:[#allocation4 + $0x28] sm:$0xf]
    %v36 = vld [vmem:[#allocation4 + $0x2c] sm:$0xf]
    %v37 = vld [vmem:[#allocation4 + $0x30] sm:$0xf]
    %v38 = vld [vmem:[#allocation4 + $0x34] sm:$0xf]
    %v39 = vld [vmem:[#allocation4 + $0x38] sm:$0xf]
    %v40 = vld [vmem:[#allocation4 + $0x3c] sm:$0xf]
    %v41 = vunpack.c.l.bf16 %v25
    %v42 = vunpack.c.l.bf16 %v26
    %v43 = vunpack.c.l.bf16 %v27
    %v44 = vunpack.c.l.bf16 %v28
    %v45 = vunpack.c.l.bf16 %v29
    %v46 = vunpack.c.l.bf16 %v30
    %v47 = vunpack.c.l.bf16 %v31
    %v48 = vunpack.c.l.bf16 %v32
    %v49 = vunpack.c.l.bf16 %v33
    %v50 = vunpack.c.l.bf16 %v34
    %v51 = vunpack.c.l.bf16 %v35
    %v52 = vunpack.c.l.bf16 %v36
    %v53 = vunpack.c.l.bf16 %v37
    %v54 = vunpack.c.l.bf16 %v38
    %v55 = vunpack.c.l.bf16 %v39
    %v56 = vunpack.c.l.bf16 %v40
    %57 = vmax.xlane.f32.xlu0 %v41
    %v58 = vpop.xlane.xlu0 %57
    %59 = vmax.xlane.f32.xlu0 %v42
    %v60 = vpop.xlane.xlu0 %59
    %61 = vmax.xlane.f32.xlu0 %v43
    %v62 = vpop.xlane.xlu0 %61
    %63 = vmax.xlane.f32.xlu0 %v44
    %v64 = vpop.xlane.xlu0 %63
    %65 = vmax.xlane.f32.xlu0 %v45
    %v66 = vpop.xlane.xlu0 %65
    %67 = vmax.xlane.f32.xlu0 %v46
    %v68 = vpop.xlane.xlu0 %67
    %69 = vmax.xlane.f32.xlu0 %v47
    %v70 = vpop.xlane.xlu0 %69
    %71 = vmax.xlane.f32.xlu0 %v48
    %v72 = vpop.xlane.xlu0 %71
    %73 = vmax.xlane.f32.xlu0 %v49
    %v74 = vpop.xlane.xlu0 %73
    %75 = vmax.xlane.f32.xlu0 %v50
    %v76 = vpop.xlane.xlu0 %75
    %77 = vmax.xlane.f32.xlu0 %v51
    %v78 = vpop.xlane.xlu0 %77
    %79 = vmax.xlane.f32.xlu0 %v52
    %v80 = vpop.xlane.xlu0 %79
    %81 = vmax.xlane.f32.xlu0 %v53
    %v82 = vpop.xlane.xlu0 %81
    %83 = vmax.xlane.f32.xlu0 %v54
    %v84 = vpop.xlane.xlu0 %83
    %85 = vmax.xlane.f32.xlu0 %v55
    %v86 = vpop.xlane.xlu0 %85
    %87 = vmax.xlane.f32.xlu0 %v56
    %v88 = vpop.xlane.xlu0 %87
    %v89 = vsub.f32 %v41, %v58
    %v90 = vsub.f32 %v42, %v60
    %v91 = vsub.f32 %v43, %v62
    %v92 = vsub.f32 %v44, %v64
    %v93 = vsub.f32 %v45, %v66
    %v94 = vsub.f32 %v46, %v68
    %v95 = vsub.f32 %v47, %v70
    %v96 = vsub.f32 %v48, %v72
    %v97 = vsub.f32 %v49, %v74
    %v98 = vsub.f32 %v50, %v76
    %v99 = vsub.f32 %v51, %v78
    %v100 = vsub.f32 %v52, %v80
    %v101 = vsub.f32 %v53, %v82
    %v102 = vsub.f32 %v54, %v84
    %v103 = vsub.f32 %v55, %v86
    %v104 = vsub.f32 %v56, %v88
    %v105 = vmul.f32 %v89, 1.442695
    %v106 = vpow.pop %v105
    %v107 = vmul.f32 %v90, 1.442695
    %v108 = vpow.pop %v107
    %v109 = vmul.f32 %v91, 1.442695
    %v110 = vpow.pop %v109
    %v111 = vmul.f32 %v92, 1.442695
    %v112 = vpow.pop %v111
    %v113 = vmul.f32 %v93, 1.442695
    %v114 = vpow.pop %v113
    %v115 = vmul.f32 %v94, 1.442695
    %v116 = vpow.pop %v115
    %v117 = vmul.f32 %v95, 1.442695
    %v118 = vpow.pop %v117
    %v119 = vmul.f32 %v96, 1.442695
    %v120 = vpow.pop %v119
    %v121 = vmul.f32 %v97, 1.442695
    %v122 = vpow.pop %v121
    %v123 = vmul.f32 %v98, 1.442695
    %v124 = vpow.pop %v123
    %v125 = vmul.f32 %v99, 1.442695
    %v126 = vpow.pop %v125
    %v127 = vmul.f32 %v100, 1.442695
    %v128 = vpow.pop %v127
    %v129 = vmul.f32 %v101, 1.442695
    %v130 = vpow.pop %v129
    %v131 = vmul.f32 %v102, 1.442695
    %v132 = vpow.pop %v131
    %v133 = vmul.f32 %v103, 1.442695
    %v134 = vpow.pop %v133
    %v135 = vmul.f32 %v104, 1.442695
    %v136 = vpow.pop %v135
    %137 = vadd.xlane.f32.xlu0 %v106
    %v138 = vpop.xlane.xlu0 %137
    %139 = vadd.xlane.f32.xlu0 %v108
    %v140 = vpop.xlane.xlu0 %139
    %141 = vadd.xlane.f32.xlu0 %v110
    %v142 = vpop.xlane.xlu0 %141
    %143 = vadd.xlane.f32.xlu0 %v112
    %v144 = vpop.xlane.xlu0 %143
    %145 = vadd.xlane.f32.xlu0 %v114
    %v146 = vpop.xlane.xlu0 %145
    %147 = vadd.xlane.f32.xlu0 %v116
    %v148 = vpop.xlane.xlu0 %147
    %149 = vadd.xlane.f32.xlu0 %v118
    %v150 = vpop.xlane.xlu0 %149
    %151 = vadd.xlane.f32.xlu0 %v120
    %v152 = vpop.xlane.xlu0 %151
    %153 = vadd.xlane.f32.xlu0 %v122
    %v154 = vpop.xlane.xlu0 %153
    %155 = vadd.xlane.f32.xlu0 %v124
    %v156 = vpop.xlane.xlu0 %155
    %157 = vadd.xlane.f32.xlu0 %v126
    %v158 = vpop.xlane.xlu0 %157
    %159 = vadd.xlane.f32.xlu0 %v128
    %v160 = vpop.xlane.xlu0 %159
    %161 = vadd.xlane.f32.xlu0 %v130
    %v162 = vpop.xlane.xlu0 %161
    %163 = vadd.xlane.f32.xlu0 %v132
    %v164 = vpop.xlane.xlu0 %163
    %165 = vadd.xlane.f32.xlu0 %v134
    %v166 = vpop.xlane.xlu0 %165
    %167 = vadd.xlane.f32.xlu0 %v136
    %v168 = vpop.xlane.xlu0 %167
    %v169 = vrcp.pop %v138
    %v170 = vmul.f32 %v106, %v169
    %v171 = vrcp.pop %v140
    %v172 = vmul.f32 %v108, %v171
    %v173 = vrcp.pop %v142
    %v174 = vmul.f32 %v110, %v173
    %v175 = vrcp.pop %v144
    %v176 = vmul.f32 %v112, %v175
    %v177 = vrcp.pop %v146
    %v178 = vmul.f32 %v114, %v177
    %v179 = vrcp.pop %v148
    %v180 = vmul.f32 %v116, %v179
    %v181 = vrcp.pop %v150
    %v182 = vmul.f32 %v118, %v181
    %v183 = vrcp.pop %v152
    %v184 = vmul.f32 %v120, %v183
    %v185 = vrcp.pop %v154
    %v186 = vmul.f32 %v122, %v185
    %v187 = vrcp.pop %v156
    %v188 = vmul.f32 %v124, %v187
    %v189 = vrcp.pop %v158
    %v190 = vmul.f32 %v126, %v189
    %v191 = vrcp.pop %v160
    %v192 = vmul.f32 %v128, %v191
    %v193 = vrcp.pop %v162
    %v194 = vmul.f32 %v130, %v193
    %v195 = vrcp.pop %v164
    %v196 = vmul.f32 %v132, %v195
    %v197 = vrcp.pop %v166
    %v198 = vmul.f32 %v134, %v197
    %v199 = vrcp.pop %v168
    %v200 = vmul.f32 %v136, %v199
    %s201 = smul.u32 0, 16384
    %v202 = vlaneseq
    %v203 = vshrl.u32 %v202, 7
    %v204 = vadd.s32 %v203, 8
    %v205 = vadd.s32 %v203, 16
    %v206 = vadd.s32 %v203, 24
    %v207 = vadd.s32 %v203, 32
    %v208 = vadd.s32 %v203, 40
    %v209 = vadd.s32 %v203, 48
    %v210 = vadd.s32 %v203, 56
    %v211 = vadd.s32 %v203, 64
    %v212 = vadd.s32 %v203, 72
    %v213 = vadd.s32 %v203, 80
    %v214 = vadd.s32 %v203, 88
    %v215 = vadd.s32 %v203, 96
    %v216 = vadd.s32 %v203, 104
    %v217 = vadd.s32 %v203, 112
    %v218 = vadd.s32 %v203, 120
    %v219 = vlaneseq
    %v220 = vand.u32 %v219, 127
    %v221 = vmul.u32 %v203, 128
    %v222 = vmul.u32 %v204, 128
    %v223 = vmul.u32 %v205, 128
    %v224 = vmul.u32 %v206, 128
    %v225 = vmul.u32 %v207, 128
    %v226 = vmul.u32 %v208, 128
    %v227 = vmul.u32 %v209, 128
    %v228 = vmul.u32 %v210, 128
    %v229 = vmul.u32 %v211, 128
    %v230 = vmul.u32 %v212, 128
    %v231 = vmul.u32 %v213, 128
    %v232 = vmul.u32 %v214, 128
    %v233 = vmul.u32 %v215, 128
    %v234 = vmul.u32 %v216, 128
    %v235 = vmul.u32 %v217, 128
    %v236 = vmul.u32 %v218, 128
    %v237 = vadd.s32 %v221, %v220
    %v238 = vadd.s32 %v222, %v220
    %v239 = vadd.s32 %v223, %v220
    %v240 = vadd.s32 %v224, %v220
    %v241 = vadd.s32 %v225, %v220
    %v242 = vadd.s32 %v226, %v220
    %v243 = vadd.s32 %v227, %v220
    %v244 = vadd.s32 %v228, %v220
    %v245 = vadd.s32 %v229, %v220
    %v246 = vadd.s32 %v230, %v220
    %v247 = vadd.s32 %v231, %v220
    %v248 = vadd.s32 %v232, %v220
    %v249 = vadd.s32 %v233, %v220
    %v250 = vadd.s32 %v234, %v220
    %v251 = vadd.s32 %v235, %v220
    %v252 = vadd.s32 %v236, %v220
    %v253 = vstv %s201
    %v254 = vadd.s32 %v237, %v253
    %v255 = vadd.s32 %v238, %v253
    %v256 = vadd.s32 %v239, %v253
    %v257 = vadd.s32 %v240, %v253
    %v258 = vadd.s32 %v241, %v253
    %v259 = vadd.s32 %v242, %v253
    %v260 = vadd.s32 %v243, %v253
    %v261 = vadd.s32 %v244, %v253
    %v262 = vadd.s32 %v245, %v253
    %v263 = vadd.s32 %v246, %v253
    %v264 = vadd.s32 %v247, %v253
    %v265 = vadd.s32 %v248, %v253
    %v266 = vadd.s32 %v249, %v253
    %v267 = vadd.s32 %v250, %v253
    %v268 = vadd.s32 %v251, %v253
    %v269 = vadd.s32 %v252, %v253
    %s270 = sld [smem:[#allocation3]]
    %s271 = smul.u32 %s270, 2654435769
    %v272 = vstv %s271
    %v273 = vadd.s32 %v254, %v272
    %v274 = vadd.s32 %v255, %v272
    %v275 = vadd.s32 %v256, %v272
    %v276 = vadd.s32 %v257, %v272
    %v277 = vadd.s32 %v258, %v272
    %v278 = vadd.s32 %v259, %v272
    %v279 = vadd.s32 %v260, %v272
    %v280 = vadd.s32 %v261, %v272
    %v281 = vadd.s32 %v262, %v272
    %v282 = vadd.s32 %v263, %v272
    %v283 = vadd.s32 %v264, %v272
    %v284 = vadd.s32 %v265, %v272
    %v285 = vadd.s32 %v266, %v272
    %v286 = vadd.s32 %v267, %v272
    %v287 = vadd.s32 %v268, %v272
    %v288 = vadd.s32 %v269, %v272
    %v289 = vshrl.u32 %v273, 16
    %v290 = vshrl.u32 %v274, 16
    %v291 = vshrl.u32 %v275, 16
    %v292 = vshrl.u32 %v276, 16
    %v293 = vshrl.u32 %v277, 16
    %v294 = vshrl.u32 %v278, 16
    %v295 = vshrl.u32 %v279, 16
    %v296 = vshrl.u32 %v280, 16
    %v297 = vshrl.u32 %v281, 16
    %v298 = vshrl.u32 %v282, 16
    %v299 = vshrl.u32 %v283, 16
    %v300 = vshrl.u32 %v284, 16
    %v301 = vshrl.u32 %v285, 16
    %v302 = vshrl.u32 %v286, 16
    %v303 = vshrl.u32 %v287, 16
    %v304 = vshrl.u32 %v288, 16
    %v305 = vxor.u32 %v273, %v289
    %v306 = vxor.u32 %v274, %v290
    %v307 = vxor.u32 %v275, %v291
    %v308 = vxor.u32 %v276, %v292
    %v309 = vxor.u32 %v277, %v293
    %v310 = vxor.u32 %v278, %v294
    %v311 = vxor.u32 %v279, %v295
    %v312 = vxor.u32 %v280, %v296
    %v313 = vxor.u32 %v281, %v297
    %v314 = vxor.u32 %v282, %v298
    %v315 = vxor.u32 %v283, %v299
    %v316 = vxor.u32 %v284, %v300
    %v317 = vxor.u32 %v285, %v301
    %v318 = vxor.u32 %v286, %v302
    %v319 = vxor.u32 %v287, %v303
    %v320 = vxor.u32 %v288, %v304
    %v321 = vmul.u32 %v305, 2146121005
    %v322 = vmul.u32 %v306, 2146121005
    %v323 = vmul.u32 %v307, 2146121005
    %v324 = vmul.u32 %v308, 2146121005
    %v325 = vmul.u32 %v309, 2146121005
    %v326 = vmul.u32 %v310, 2146121005
    %v327 = vmul.u32 %v311, 2146121005
    %v328 = vmul.u32 %v312, 2146121005
    %v329 = vmul.u32 %v313, 2146121005
    %v330 = vmul.u32 %v314, 2146121005
    %v331 = vmul.u32 %v315, 2146121005
    %v332 = vmul.u32 %v316, 2146121005
    %v333 = vmul.u32 %v317, 2146121005
    %v334 = vmul.u32 %v318, 2146121005
    %v335 = vmul.u32 %v319, 2146121005
    %v336 = vmul.u32 %v320, 2146121005
    %v337 = vshrl.u32 %v321, 15
    %v338 = vshrl.u32 %v322, 15
    %v339 = vshrl.u32 %v323, 15
    %v340 = vshrl.u32 %v324, 15
    %v341 = vshrl.u32 %v325, 15
    %v342 = vshrl.u32 %v326, 15
    %v343 = vshrl.u32 %v327, 15
    %v344 = vshrl.u32 %v328, 15
    %v345 = vshrl.u32 %v329, 15
    %v346 = vshrl.u32 %v330, 15
    %v347 = vshrl.u32 %v331, 15
    %v348 = vshrl.u32 %v332, 15
    %v349 = vshrl.u32 %v333, 15
    %v350 = vshrl.u32 %v334, 15
    %v351 = vshrl.u32 %v335, 15
    %v352 = vshrl.u32 %v336, 15
    %v353 = vxor.u32 %v321, %v337
    %v354 = vxor.u32 %v322, %v338
    %v355 = vxor.u32 %v323, %v339
    %v356 = vxor.u32 %v324, %v340
    %v357 = vxor.u32 %v325, %v341
    %v358 = vxor.u32 %v326, %v342
    %v359 = vxor.u32 %v327, %v343
    %v360 = vxor.u32 %v328, %v344
    %v361 = vxor.u32 %v329, %v345
    %v362 = vxor.u32 %v330, %v346
    %v363 = vxor.u32 %v331, %v347
    %v364 = vxor.u32 %v332, %v348
    %v365 = vxor.u32 %v333, %v349
    %v366 = vxor.u32 %v334, %v350
    %v367 = vxor.u32 %v335, %v351
    %v368 = vxor.u32 %v336, %v352
    %v369 = vmul.u32 %v353, 2221713035
    %v370 = vmul.u32 %v354, 2221713035
    %v371 = vmul.u32 %v355, 2221713035
    %v372 = vmul.u32 %v356, 2221713035
    %v373 = vmul.u32 %v357, 2221713035
    %v374 = vmul.u32 %v358, 2221713035
    %v375 = vmul.u32 %v359, 2221713035
    %v376 = vmul.u32 %v360, 2221713035
    %v377 = vmul.u32 %v361, 2221713035
    %v378 = vmul.u32 %v362, 2221713035
    %v379 = vmul.u32 %v363, 2221713035
    %v380 = vmul.u32 %v364, 2221713035
    %v381 = vmul.u32 %v365, 2221713035
    %v382 = vmul.u32 %v366, 2221713035
    %v383 = vmul.u32 %v367, 2221713035
    %v384 = vmul.u32 %v368, 2221713035
    %v385 = vshrl.u32 %v369, 16
    %v386 = vshrl.u32 %v370, 16
    %v387 = vshrl.u32 %v371, 16
    %v388 = vshrl.u32 %v372, 16
    %v389 = vshrl.u32 %v373, 16
    %v390 = vshrl.u32 %v374, 16
    %v391 = vshrl.u32 %v375, 16
    %v392 = vshrl.u32 %v376, 16
    %v393 = vshrl.u32 %v377, 16
    %v394 = vshrl.u32 %v378, 16
    %v395 = vshrl.u32 %v379, 16
    %v396 = vshrl.u32 %v380, 16
    %v397 = vshrl.u32 %v381, 16
    %v398 = vshrl.u32 %v382, 16
    %v399 = vshrl.u32 %v383, 16
    %v400 = vshrl.u32 %v384, 16
    %v401 = vxor.u32 %v369, %v385
    %v402 = vxor.u32 %v370, %v386
    %v403 = vxor.u32 %v371, %v387
    %v404 = vxor.u32 %v372, %v388
    %v405 = vxor.u32 %v373, %v389
    %v406 = vxor.u32 %v374, %v390
    %v407 = vxor.u32 %v375, %v391
    %v408 = vxor.u32 %v376, %v392
    %v409 = vxor.u32 %v377, %v393
    %v410 = vxor.u32 %v378, %v394
    %v411 = vxor.u32 %v379, %v395
    %v412 = vxor.u32 %v380, %v396
    %v413 = vxor.u32 %v381, %v397
    %v414 = vxor.u32 %v382, %v398
    %v415 = vxor.u32 %v383, %v399
    %v416 = vxor.u32 %v384, %v400
    %vm417 = vcmp.ge.u32.totalorder %v401, 858993459
    %vm418 = vcmp.ge.u32.totalorder %v402, 858993459
    %vm419 = vcmp.ge.u32.totalorder %v403, 858993459
    %vm420 = vcmp.ge.u32.totalorder %v404, 858993459
    %vm421 = vcmp.ge.u32.totalorder %v405, 858993459
    %vm422 = vcmp.ge.u32.totalorder %v406, 858993459
    %vm423 = vcmp.ge.u32.totalorder %v407, 858993459
    %vm424 = vcmp.ge.u32.totalorder %v408, 858993459
    %vm425 = vcmp.ge.u32.totalorder %v409, 858993459
    %vm426 = vcmp.ge.u32.totalorder %v410, 858993459
    %vm427 = vcmp.ge.u32.totalorder %v411, 858993459
    %vm428 = vcmp.ge.u32.totalorder %v412, 858993459
    %vm429 = vcmp.ge.u32.totalorder %v413, 858993459
    %vm430 = vcmp.ge.u32.totalorder %v414, 858993459
    %vm431 = vcmp.ge.u32.totalorder %v415, 858993459
    %vm432 = vcmp.ge.u32.totalorder %v416, 858993459
    %v433 = vmul.f32 %v170, 1.25
    %v434 = vmul.f32 %v172, 1.25
    %v435 = vmul.f32 %v174, 1.25
    %v436 = vmul.f32 %v176, 1.25
    %v437 = vmul.f32 %v178, 1.25
    %v438 = vmul.f32 %v180, 1.25
    %v439 = vmul.f32 %v182, 1.25
    %v440 = vmul.f32 %v184, 1.25
    %v441 = vmul.f32 %v186, 1.25
    %v442 = vmul.f32 %v188, 1.25
    %v443 = vmul.f32 %v190, 1.25
    %v444 = vmul.f32 %v192, 1.25
    %v445 = vmul.f32 %v194, 1.25
    %v446 = vmul.f32 %v196, 1.25
    %v447 = vmul.f32 %v198, 1.25
    %v448 = vmul.f32 %v200, 1.25
    %v449 = vsel %vm417, %v433, 0.0
    %v450 = vsel %vm418, %v434, 0.0
    %v451 = vsel %vm419, %v435, 0.0
    %v452 = vsel %vm420, %v436, 0.0
    %v453 = vsel %vm421, %v437, 0.0
    %v454 = vsel %vm422, %v438, 0.0
    %v455 = vsel %vm423, %v439, 0.0
    %v456 = vsel %vm424, %v440, 0.0
    %v457 = vsel %vm425, %v441, 0.0
    %v458 = vsel %vm426, %v442, 0.0
    %v459 = vsel %vm427, %v443, 0.0
    %v460 = vsel %vm428, %v444, 0.0
    %v461 = vsel %vm429, %v445, 0.0
    %v462 = vsel %vm430, %v446, 0.0
    %v463 = vsel %vm431, %v447, 0.0
    %v464 = vsel %vm432, %v448, 0.0
    %v465 = vpack.c.bf16 %v450, %v449
    %v466 = vpack.c.bf16 %v452, %v451
    %v467 = vpack.c.bf16 %v454, %v453
    %v468 = vpack.c.bf16 %v456, %v455
    %v469 = vpack.c.bf16 %v458, %v457
    %v470 = vpack.c.bf16 %v460, %v459
    %v471 = vpack.c.bf16 %v462, %v461
    %v472 = vpack.c.bf16 %v464, %v463
    %v481 = vunpack.c.l.b16 %v465
    %v482 = vunpack.c.h.b16 %v465
    %v483 = vunpack.c.l.b16 %v466
    %v484 = vunpack.c.h.b16 %v466
    %v485 = vunpack.c.l.b16 %v467
    %v486 = vunpack.c.h.b16 %v467
    %v487 = vunpack.c.l.b16 %v468
    %v488 = vunpack.c.h.b16 %v468
    %v489 = vunpack.c.l.b16 %v469
    %v490 = vunpack.c.h.b16 %v469
    %v491 = vunpack.c.l.b16 %v470
    %v492 = vunpack.c.h.b16 %v470
    %v493 = vunpack.c.l.b16 %v471
    %v494 = vunpack.c.h.b16 %v471
    %v495 = vunpack.c.l.b16 %v472
    %v496 = vunpack.c.h.b16 %v472
    %v497 = vpack.c.b16 %v481, %v481
    %v498 = vpack.c.b16 %v482, %v482
    %v499 = vpack.c.b16 %v483, %v483
    %v500 = vpack.c.b16 %v484, %v484
    %v501 = vpack.c.b16 %v485, %v485
    %v502 = vpack.c.b16 %v486, %v486
    %v503 = vpack.c.b16 %v487, %v487
    %v504 = vpack.c.b16 %v488, %v488
    %v505 = vpack.c.b16 %v489, %v489
    %v506 = vpack.c.b16 %v490, %v490
    %v507 = vpack.c.b16 %v491, %v491
    %v508 = vpack.c.b16 %v492, %v492
    %v509 = vpack.c.b16 %v493, %v493
    %v510 = vpack.c.b16 %v494, %v494
    %v511 = vpack.c.b16 %v495, %v495
    %v512 = vpack.c.b16 %v496, %v496
    %529 = vst [vmem:[#allocation7] sm:$0xf] %v497
    %530 = vst [vmem:[#allocation7 + $0x4] sm:$0xf] %v498
    %531 = vst [vmem:[#allocation7 + $0x8] sm:$0xf] %v499
    %532 = vst [vmem:[#allocation7 + $0xc] sm:$0xf] %v500
    %533 = vst [vmem:[#allocation7 + $0x10] sm:$0xf] %v501
    %534 = vst [vmem:[#allocation7 + $0x14] sm:$0xf] %v502
    %535 = vst [vmem:[#allocation7 + $0x18] sm:$0xf] %v503
    %536 = vst [vmem:[#allocation7 + $0x1c] sm:$0xf] %v504
    %537 = vst [vmem:[#allocation7 + $0x20] sm:$0xf] %v505
    %538 = vst [vmem:[#allocation7 + $0x24] sm:$0xf] %v506
    %539 = vst [vmem:[#allocation7 + $0x28] sm:$0xf] %v507
    %540 = vst [vmem:[#allocation7 + $0x2c] sm:$0xf] %v508
    %541 = vst [vmem:[#allocation7 + $0x30] sm:$0xf] %v509
    %542 = vst [vmem:[#allocation7 + $0x34] sm:$0xf] %v510
    %543 = vst [vmem:[#allocation7 + $0x38] sm:$0xf] %v511
    %544 = vst [vmem:[#allocation7 + $0x3c] sm:$0xf] %v512
    // Predicated region
    $region10: #{net_forward.1} parent=1 // pred_check
      _
    $region11: #{net_forward.1} parent=1 // pred_check_branch
      %546 = sbr.rel (0) target = $region13
    $region12: #{net_forward.1} parent=1 // pred_region
      %s548 = ssub.s32 1024, 1024
      %549 = vsyncadd [#allocation6], %s548
      %s550 = sshll.u32 [#allocation7], 4
      %s551 = int_to_ptr.vmem [resolvable:$true] %s550
      %556 = dma.vmem_to_hbm [thread:$0]  %s551, 1024, %s2, [#allocation6], 64, 64, 4
    $region13: #{net_forward.1} parent=1 // pred_fallthru
      _
    // Predicated region
    $region14: #{net_forward.1} parent=1 // pred_check
      _
    $region15: #{net_forward.1} parent=1 // pred_check_branch
      %558 = sbr.rel (0) target = $region17
    $region16: #{net_forward.1} parent=1 // pred_region
      %559 = dma.done [#allocation6], 1024
    $region17: #{net_forward.1} parent=1 // pred_fallthru
      _
    %560 = vsyncpa [#allocation5], 1
    %561 = vsyncpa [#allocation6], 1

</llo_original>
